<compile_context>
chip_gen: v6e
topology: v6e:2x2x1
jax: 0.10.0
libtpu: 0.0.40
codegen_flags: <defaults>
</compile_context>

<pallas_src>
import jax
import jax.numpy as jnp
from jax import lax
from jax.experimental import pallas as pl
from jax.experimental.pallas import tpu as pltpu


def _round_up(x: int, m: int) -> int:
    return ((x + m - 1) // m) * m


def _cdiv(a: int, b: int) -> int:
    return (a + b - 1) // b


def classification_head(x_nhwc, weight, bias, *, tb=None, act_window_bytes=None):
    """x_nhwc: (B, H, W, C); weight: (num_classes, C) [PyTorch layout]; bias: (num_classes,)."""
    B, H, W, C = x_nhwc.shape
    NC = weight.shape[0]
    HW = H * W
    itemsize = x_nhwc.dtype.itemsize
    sub = {4: 8, 2: 16, 1: 32}.get(itemsize, 8)      # sublane multiple for the x dtype

    # ---- generation-aware VMEM budget for the double-buffered activation window ----
    try:
        vmem_cap = int(pltpu.get_tpu_info().vmem_capacity_bytes)
    except Exception:
        vmem_cap = 64 * 1024 * 1024                  # conservative (v7x-sized) fallback
    if act_window_bytes is None:
        # ~45% of VMEM for the 2x-buffered x window: ~48 MiB on v5e/v6e, ~28 MiB on v7x.
        act_window_bytes = min(int(vmem_cap * 0.45), 48 * 1024 * 1024)
    vmem_limit = int(min(vmem_cap * 0.9, 120 * 1024 * 1024))

    # ---- batch tile: prefer >= 2 tiles (keeps both v7x TensorCores busy), tb % 8 == 0 ----
    if B <= 8:
        tb = B          # single tile; block == full dim so no batch padding at all
        # TODO(synk): for B <= 8 on v7x, shard the HW reduction itself across the two
        # TensorCores (two partial pools + tiny combine) instead of leaving one core idle.
    else:
        if tb is None:
            tb = min(128, _round_up(_cdiv(B, 2), 8))
        tb = max(8, min(_round_up(tb, 8), _round_up(B, 8)))
    n_b = _cdiv(B, tb)
    b_out = n_b * tb    # padded rows exist only in the (tiny) kernel output, never in x

    # ---- spatial tile: (nearly) divide HW, dtype-aware rounding, no x padding ----
    thw_max = max(sub, act_window_bytes // (2 * tb * C * itemsize))
    if thw_max >= HW:
        thw = HW        # single tile == full dim (any row count is legal for a full block)
    else:
        thw = _round_up(_cdiv(HW, _cdiv(HW, thw_max)), sub)
    n_hw = _cdiv(HW, thw)
    rem = HW - (n_hw - 1) * thw      # valid rows in the last HW tile (static Python int)
    needs_mask = rem != thw
    grouped = (thw % sub == 0)       # layout-preserving accumulation path available?

    # ---- lane-dense output: pad num_classes to a 128 multiple (weights/bias only, tiny) ----
    ncp = _round_up(NC, 128)
    w_t = jnp.zeros((C, ncp), weight.dtype).at[:, :NC].set(weight.T)
    b2d = jnp.zeros((1, ncp), jnp.float32).at[:, :NC].set(bias.astype(jnp.float32))

    x_flat = x_nhwc.reshape(B, HW, C)   # contiguous reshape; no HBM pad/copy of x
    inv_hw = 1.0 / float(HW)            # divide by the *true* spatial size

    def head_kernel(x_ref, w_ref, b_ref, o_ref, acc_ref):
        k = pl.program_id(1)

        @pl.when(k == 0)
        def _init():
            acc_ref[...] = jnp.zeros_like(acc_ref)

        def accumulate(xb):
            if grouped:
                # (tb, thw, C) -> (tb, thw//sub, sub, C): tile-aligned reshape; the sum over
                # axis=1 is pure f32 vreg adds into the layout-matched (tb, sub, C) scratch.
                acc_ref[...] += xb.reshape(tb, thw // sub, sub, C).sum(
                    axis=1, dtype=jnp.float32)
            else:
                # Only reachable for a single HW tile whose row count isn't a sublane multiple.
                acc_ref[:, 0:1, :] += jnp.sum(xb, axis=1, keepdims=True, dtype=jnp.float32)

        if needs_mask:
            @pl.when(k < n_hw - 1)
            def _steady():
                accumulate(x_ref[...])

            @pl.when(k == n_hw - 1)
            def _tail():
                valid = lax.broadcasted_iota(jnp.int32, (thw, C), 0) < rem
                accumulate(jnp.where(valid[None, :, :], x_ref[...], 0))
        else:
            accumulate(x_ref[...])

        @pl.when(k == n_hw - 1)
        def _finish():
            # Single sublane reduce + mean scale, then the tiny MXU matmul + bias.
            pooled = acc_ref[...].sum(axis=1) * jnp.float32(inv_hw)      # (tb, C) f32
            w = w_ref[...]
            lhs = pooled if w.dtype == jnp.float32 else pooled.astype(w.dtype)
            logits = jnp.dot(lhs, w, preferred_element_type=jnp.float32)  # (tb, ncp)
            o_ref[...] = (logits + b_ref[...]).astype(o_ref.dtype)

    cost = pl.CostEstimate(
        flops=int(B * HW * C + 2 * B * C * ncp),
        transcendentals=0,
        bytes_accessed=int(B * HW * C * itemsize
                           + C * ncp * w_t.dtype.itemsize
                           + b_out * ncp * 4),
    )

    out = pl.pallas_call(
        head_kernel,
        out_shape=jax.ShapeDtypeStruct((b_out, ncp), jnp.float32),
        grid_spec=pltpu.PrefetchScalarGridSpec(
            num_scalar_prefetch=0,
            grid=(n_b, n_hw),
            in_specs=[
                pl.BlockSpec((tb, thw, C), lambda i, k: (i, k, 0)),   # activations (tiled)
                pl.BlockSpec((C, ncp), lambda i, k: (0, 0)),          # weight (VMEM-resident)
                pl.BlockSpec((1, ncp), lambda i, k: (0, 0)),          # bias   (VMEM-resident)
            ],
            out_specs=pl.BlockSpec((tb, ncp), lambda i, k: (i, 0)),
            scratch_shapes=[pltpu.VMEM((tb, sub, C), jnp.float32)],
        ),
        compiler_params=pltpu.CompilerParams(
            dimension_semantics=("parallel", "arbitrary"),
            vmem_limit_bytes=vmem_limit),
        cost_estimate=cost,
    )(x_flat, w_t, b2d)

    return out[:B, :NC]


def _reference(x_nhwc, weight, bias):
    # Pure-JAX reference mirroring the PyTorch forward.
    pooled = jnp.mean(x_nhwc.astype(jnp.float32), axis=(1, 2))   # (B, C)
    return pooled @ weight.astype(jnp.float32).T + bias.astype(jnp.float32)


if __name__ == "__main__":
    # Small shapes consistent with the module (embed_dim shrunk from 384 -> 128).
    B, H, W, C, NUM_CLASSES = 2, 8, 8, 128, 10

    key = jax.random.PRNGKey(0)
    kx, kw, kb = jax.random.split(key, 3)

    x = jax.random.normal(kx, (B, H, W, C), dtype=jnp.float32)

    # Deterministic Linear init (PyTorch-style uniform bound 1/sqrt(fan_in)).
    bound = 1.0 / jnp.sqrt(jnp.float32(C))
    weight = jax.random.uniform(kw, (NUM_CLASSES, C), jnp.float32, -bound, bound)
    bias = jax.random.uniform(kb, (NUM_CLASSES,), jnp.float32, -bound, bound)

    out = classification_head(x, weight, bias)
    out = jax.block_until_ready(out)

    ref = _reference(x, weight, bias)
    assert out.shape == (B, NUM_CLASSES)
    assert jnp.allclose(out, ref, atol=1e-4, rtol=1e-4), "mismatch vs reference"

    print("KERNEL_OK")
</pallas_src>

<mosaic_0001>
module attributes {stable_mosaic.version = 11 : i64} {
  func.func @head_kernel(%arg0: i32, %arg1: i32, %arg2: memref<2x64x128xf32, #tpu.memory_space<vmem>>, %arg3: memref<128x128xf32, #tpu.memory_space<vmem>>, %arg4: memref<1x128xf32, #tpu.memory_space<vmem>>, %arg5: memref<2x128xf32, #tpu.memory_space<vmem>>, %arg6: memref<2x8x128xf32, #tpu.memory_space<vmem>>) attributes {dimension_semantics = [#tpu.dimension_semantics<parallel>, #tpu.dimension_semantics<arbitrary>], iteration_bounds = array<i64: 1, 1>, scalar_prefetch = 0 : i64, scratch_operands = 1 : i64, tpu.core_type = #tpu.core_type<tc>, window_params = [{transform_indices = @transform_0, window_bounds = array<i64: 2, 64, 128>}, {pipeline_mode = #tpu.pipeline_mode<synchronous>, transform_indices = @transform_1, window_bounds = array<i64: 128, 128>}, {pipeline_mode = #tpu.pipeline_mode<synchronous>, transform_indices = @transform_2, window_bounds = array<i64: 1, 128>}, {transform_indices = @transform_3, window_bounds = array<i64: 2, 128>}]} {
    %c0_i32 = arith.constant 0 : i32
    %0 = arith.cmpi eq, %arg1, %c0_i32 : i32
    %1 = arith.extui %0 : i1 to i32
    %c0_i32_0 = arith.constant 0 : i32
    %2 = arith.cmpi ne, %1, %c0_i32_0 : i32
    scf.if %2 {
      %cst_11 = arith.constant 0.000000e+00 : f32
      %12 = vector.broadcast %cst_11 : f32 to vector<2x8x128xf32>
      %c0_12 = arith.constant 0 : index
      %c0_13 = arith.constant 0 : index
      %c0_14 = arith.constant 0 : index
      %13 = vector.load %arg6[%c0_12, %c0_13, %c0_14] : memref<2x8x128xf32, #tpu.memory_space<vmem>>, vector<2x8x128xf32>
      tpu.vector_store %arg6[%c0_12, %c0_13, %c0_14], %12 {strides = array<i32>} : memref<2x8x128xf32, #tpu.memory_space<vmem>>, vector<2x8x128xf32>,
    } else {
    }
    %c0 = arith.constant 0 : index
    %c0_1 = arith.constant 0 : index
    %c0_2 = arith.constant 0 : index
    %3 = vector.load %arg2[%c0, %c0_1, %c0_2] : memref<2x64x128xf32, #tpu.memory_space<vmem>>, vector<2x64x128xf32>
    %c0_3 = arith.constant 0 : index
    %c0_4 = arith.constant 0 : index
    %c0_5 = arith.constant 0 : index
    %4 = vector.load %arg6[%c0_3, %c0_4, %c0_5] : memref<2x8x128xf32, #tpu.memory_space<vmem>>, vector<2x8x128xf32>
    %5 = vector.shape_cast %3 : vector<2x64x128xf32> to vector<2x8x8x128xf32>
    %cst = arith.constant dense<0.000000e+00> : vector<2x8x128xf32>
    %6 = vector.multi_reduction <add>, %5, %cst [1] : vector<2x8x8x128xf32> to vector<2x8x128xf32>
    %7 = arith.addf %4, %6 : vector<2x8x128xf32>
    %c0_6 = arith.constant 0 : index
    %c0_7 = arith.constant 0 : index
    %c0_8 = arith.constant 0 : index
    %8 = vector.load %arg6[%c0_6, %c0_7, %c0_8] : memref<2x8x128xf32, #tpu.memory_space<vmem>>, vector<2x8x128xf32>
    tpu.vector_store %arg6[%c0_6, %c0_7, %c0_8], %7 {strides = array<i32>} : memref<2x8x128xf32, #tpu.memory_space<vmem>>, vector<2x8x128xf32>,
    %c0_i32_9 = arith.constant 0 : i32
    %9 = arith.cmpi eq, %arg1, %c0_i32_9 : i32
    %10 = arith.extui %9 : i1 to i32
    %c0_i32_10 = arith.constant 0 : i32
    %11 = arith.cmpi ne, %10, %c0_i32_10 : i32
    scf.if %11 {
      %c0_11 = arith.constant 0 : index
      %c0_12 = arith.constant 0 : index
      %c0_13 = arith.constant 0 : index
      %12 = vector.load %arg6[%c0_11, %c0_12, %c0_13] : memref<2x8x128xf32, #tpu.memory_space<vmem>>, vector<2x8x128xf32>
      %cst_14 = arith.constant dense<0.000000e+00> : vector<2x128xf32>
      %13 = vector.multi_reduction <add>, %12, %cst_14 [1] : vector<2x8x128xf32> to vector<2x128xf32>
      %cst_15 = arith.constant 1.562500e-02 : f32
      %14 = vector.broadcast %cst_15 : f32 to vector<2x128xf32>
      %15 = arith.mulf %13, %14 : vector<2x128xf32>
      %c0_16 = arith.constant 0 : index
      %c0_17 = arith.constant 0 : index
      %16 = vector.load %arg3[%c0_16, %c0_17] : memref<128x128xf32, #tpu.memory_space<vmem>>, vector<128x128xf32>
      %cst_18 = arith.constant dense<0.000000e+00> : vector<2x128xf32>
      %17 = tpu.matmul %15, %16, %cst_18 {dimension_numbers = #tpu.dot_dimension_numbers<[1], [0], [0], [1], [0, 0, 1, 1], [], []>} : vector<2x128xf32>, vector<128x128xf32>, vector<2x128xf32> -> vector<2x128xf32>
      %c0_19 = arith.constant 0 : index
      %c0_20 = arith.constant 0 : index
      %18 = vector.load %arg4[%c0_19, %c0_20] : memref<1x128xf32, #tpu.memory_space<vmem>>, vector<1x128xf32>
      %19 = vector.broadcast %18 : vector<1x128xf32> to vector<2x128xf32>
      %20 = arith.addf %17, %19 : vector<2x128xf32>
      %c0_21 = arith.constant 0 : index
      %c0_22 = arith.constant 0 : index
      %21 = vector.load %arg5[%c0_21, %c0_22] : memref<2x128xf32, #tpu.memory_space<vmem>>, vector<2x128xf32>
      tpu.vector_store %arg5[%c0_21, %c0_22], %20 {strides = array<i32>} : memref<2x128xf32, #tpu.memory_space<vmem>>, vector<2x128xf32>,
    } else {
    }
    return
  }
  func.func @transform_0(%arg0: i32, %arg1: i32) -> (i32, i32, i32) {
    %c0_i32 = arith.constant 0 : i32
    %c0_i32_0 = arith.constant 0 : i32
    return %arg0, %arg1, %c0_i32 : i32, i32, i32
  }
  func.func @transform_1(%arg0: i32, %arg1: i32) -> (i32, i32) {
    %c0_i32 = arith.constant 0 : i32
    %c0_i32_0 = arith.constant 0 : i32
    %c0_i32_1 = arith.constant 0 : i32
    return %c0_i32, %c0_i32_0 : i32, i32
  }
  func.func @transform_2(%arg0: i32, %arg1: i32) -> (i32, i32) {
    %c0_i32 = arith.constant 0 : i32
    %c0_i32_0 = arith.constant 0 : i32
    %c0_i32_1 = arith.constant 0 : i32
    return %c0_i32, %c0_i32_0 : i32, i32
  }
  func.func @transform_3(%arg0: i32, %arg1: i32) -> (i32, i32) {
    %c0_i32 = arith.constant 0 : i32
    %c0_i32_0 = arith.constant 0 : i32
    return %arg0, %c0_i32 : i32, i32
  }
}

</mosaic_0001>

<llo_original>
// kernel: tpu_custom_call.1
$region0: #{tpu_custom_call.1}
  #allocation0 [shape = 'u32[]', space=smem, size = 0x4, offset = 0x4, fixed_abs, tag = 'smem constant byte address 0x4 - core index']
  #allocation1 [shape = 'u32[144,128]{1,0:T(1,128)}', space=vmem, size = 0x12000, scoped, tag = 'internal scratch']
  #allocation2 [shape = 'f32[2,8,128]{2,1,0:T(8,128)}', space=vmem, size = 0x2000, scoped, tag = 'scratch operand']
  %s0 = inlined_call_operand.hbm [shape: f32[2,64,128], index: 0, kind: input, shape index: {}]
  %s1 = inlined_call_operand.hbm [shape: f32[128,128], index: 1, kind: input, shape index: {}]
  %s2 = inlined_call_operand.vmem [shape: f32[1,128], index: 2, kind: input, shape index: {}]
  %s3 = inlined_call_operand.hbm [shape: f32[2,128], index: 3, kind: output, shape index: {}]
  %s4 = sld [smem:[#allocation0]]
  $region38: #{tpu_custom_call.1} parent=0
    _
  %s6 = ssub.s32 1, %s4
  %s7 = scalar_select 0, %s6, %s4
  $region1: #{tpu_custom_call.1} parent=0
    #allocation3 [shape = 'u8[65536]{0}', space=vmem, size = 0x10000, scoped, tag = 'input window, operand 0, single buffered']
    #allocation4 [shape = 's32[1]{0}', space=sflag, size = 0x4, scoped, tag = 'scoped memory for tpu_custom_call.1']
    #allocation5 [shape = 's32[1]{0}', space=sflag, size = 0x4, scoped, tag = 'scoped memory for tpu_custom_call.1']
    #allocation6 [shape = 'u8[65536]{0}', space=vmem, size = 0x10000, scoped, tag = 'input window, operand 1, single buffered']
    #allocation7 [shape = 's32[1]{0}', space=sflag, size = 0x4, scoped, tag = 'scoped memory for tpu_custom_call.1']
    #allocation8 [shape = 'u8[1024]{0}', space=vmem, size = 0x400, scoped, tag = 'output window, operand 0, single buffered']
    %8 = vsyncpa [#allocation4], 0
    %9 = vsyncpa [#allocation7], 0
    %10 = vsyncpa [#allocation5], 0
    // Predicated region
    $region2: #{tpu_custom_call.1} parent=1 // pred_check
      _
    $region3: #{tpu_custom_call.1} parent=1 // pred_check_branch
      %12 = sbr.rel (0) target = $region5
    $region4: #{tpu_custom_call.1} parent=1 // pred_region
      %s14 = ssub.s32 2048, 2048
      %15 = vsyncadd [#allocation4], %s14
      %s16 = sshll.u32 [#allocation3], 4
      %s17 = int_to_ptr.vmem [resolvable:$true] %s16
      %22 = dma.hbm_to_vmem [thread:$0]  %s0, 2048, %s17, [#allocation4], 128, 128, 8
    $region5: #{tpu_custom_call.1} parent=1 // pred_fallthru
      _
    // Predicated region
    $region6: #{tpu_custom_call.1} parent=1 // pred_check
      _
    $region7: #{tpu_custom_call.1} parent=1 // pred_check_branch
      %24 = sbr.rel (0) target = $region9
    $region8: #{tpu_custom_call.1} parent=1 // pred_region
      %s26 = ssub.s32 2048, 2048
      %27 = vsyncadd [#allocation7], %s26
      %s28 = sshll.u32 [#allocation6], 4
      %s29 = int_to_ptr.vmem [resolvable:$true] %s28
      %34 = dma.hbm_to_vmem [thread:$0]  %s1, 2048, %s29, [#allocation7], 128, 128, 8
    $region9: #{tpu_custom_call.1} parent=1 // pred_fallthru
      _
    // Predicated region
    $region10: #{tpu_custom_call.1} parent=1 // pred_check
      _
    $region11: #{tpu_custom_call.1} parent=1 // pred_check_branch
      %36 = sbr.rel (0) target = $region13
    $region12: #{tpu_custom_call.1} parent=1 // pred_region
      _
    $region13: #{tpu_custom_call.1} parent=1 // pred_fallthru
      _
    // Predicated region
    $region14: #{tpu_custom_call.1} parent=1 // pred_check
      _
    $region15: #{tpu_custom_call.1} parent=1 // pred_check_branch
      %38 = sbr.rel (0) target = $region17
    $region16: #{tpu_custom_call.1} parent=1 // pred_region
      %39 = dma.done [#allocation4], 2048
    $region17: #{tpu_custom_call.1} parent=1 // pred_fallthru
      _
    // Predicated region
    $region18: #{tpu_custom_call.1} parent=1 // pred_check
      _
    $region19: #{tpu_custom_call.1} parent=1 // pred_check_branch
      %41 = sbr.rel (0) target = $region21
    $region20: #{tpu_custom_call.1} parent=1 // pred_region
      %42 = dma.done [#allocation7], 2048
    $region21: #{tpu_custom_call.1} parent=1 // pred_fallthru
      _
    %p43 = scmp.eq.s32.totalorder 0, 0
    // Predicated region
    $region22: #{tpu_custom_call.1} parent=1 // pred_check
      %p44 = pneg %p43
    $region23: #{tpu_custom_call.1} parent=1 // pred_check_branch
      %46 = sbr.rel (%p44) target = $region25
    $region24: #{tpu_custom_call.1} parent=1 // pred_region
      %47 = vst [vmem:[#allocation2] sm:$0xff] 0.0
      %48 = vst [vmem:[#allocation2 + $0x8] sm:$0xff] 0.0
    $region25: #{tpu_custom_call.1} parent=1 // pred_fallthru
      _
    %v49 = vld [vmem:[#allocation3] sm:$0xff]
    %v50 = vld [vmem:[#allocation3 + $0x8] sm:$0xff]
    %v51 = vld [vmem:[#allocation3 + $0x10] sm:$0xff]
    %v52 = vld [vmem:[#allocation3 + $0x18] sm:$0xff]
    %v53 = vld [vmem:[#allocation3 + $0x20] sm:$0xff]
    %v54 = vld [vmem:[#allocation3 + $0x28] sm:$0xff]
    %v55 = vld [vmem:[#allocation3 + $0x30] sm:$0xff]
    %v56 = vld [vmem:[#allocation3 + $0x38] sm:$0xff]
    %v57 = vld [vmem:[#allocation3 + $0x40] sm:$0xff]
    %v58 = vld [vmem:[#allocation3 + $0x48] sm:$0xff]
    %v59 = vld [vmem:[#allocation3 + $0x50] sm:$0xff]
    %v60 = vld [vmem:[#allocation3 + $0x58] sm:$0xff]
    %v61 = vld [vmem:[#allocation3 + $0x60] sm:$0xff]
    %v62 = vld [vmem:[#allocation3 + $0x68] sm:$0xff]
    %v63 = vld [vmem:[#allocation3 + $0x70] sm:$0xff]
    %v64 = vld [vmem:[#allocation3 + $0x78] sm:$0xff]
    %v65 = vld [vmem:[#allocation2] sm:$0xff]
    %v66 = vld [vmem:[#allocation2 + $0x8] sm:$0xff]
    %v67 = vadd.f32 %v49, %v50
    %v68 = vadd.f32 %v67, %v51
    %v69 = vadd.f32 %v68, %v52
    %v70 = vadd.f32 %v69, %v53
    %v71 = vadd.f32 %v70, %v54
    %v72 = vadd.f32 %v71, %v55
    %v73 = vadd.f32 %v72, %v56
    %v74 = vadd.f32 %v57, %v58
    %v75 = vadd.f32 %v74, %v59
    %v76 = vadd.f32 %v75, %v60
    %v77 = vadd.f32 %v76, %v61
    %v78 = vadd.f32 %v77, %v62
    %v79 = vadd.f32 %v78, %v63
    %v80 = vadd.f32 %v79, %v64
    %v81 = vadd.f32 %v65, %v73
    %v82 = vadd.f32 %v66, %v80
    %83 = vst [vmem:[#allocation2] sm:$0xff] %v81
    %84 = vst [vmem:[#allocation2 + $0x8] sm:$0xff] %v82
    // Predicated region
    $region26: #{tpu_custom_call.1} parent=1 // pred_check
      %p85 = pneg %p43
    $region27: #{tpu_custom_call.1} parent=1 // pred_check_branch
      %87 = sbr.rel (%p85) target = $region29
    $region28: #{tpu_custom_call.1} parent=1 // pred_region
      %v88 = vld [vmem:[#allocation2] sm:$0xff]
      %v89 = vld [vmem:[#allocation2 + $0x8] sm:$0xff]
      %v90 = vrot.slane %v88, 4
      %v91 = vadd.f32 %v88, %v90
      %v92 = vrot.slane %v91, 2
      %v93 = vadd.f32 %v91, %v92
      %v94 = vrot.slane %v93, 1
      %v95 = vadd.f32 %v93, %v94
      %v96 = vrot.slane %v89, 4
      %v97 = vadd.f32 %v89, %v96
      %v98 = vrot.slane %v97, 2
      %v99 = vadd.f32 %v97, %v98
      %v100 = vrot.slane %v99, 1
      %v101 = vadd.f32 %v99, %v100
      %v102 = vmul.f32 %v95, 0.015625
      %v103 = vmul.f32 %v101, 0.015625
      %v104 = vld [vmem:[#allocation6] sm:$0xff]
      %v105 = vld [vmem:[#allocation6 + $0x8] sm:$0xff]
      %v106 = vld [vmem:[#allocation6 + $0x10] sm:$0xff]
      %v107 = vld [vmem:[#allocation6 + $0x18] sm:$0xff]
      %v108 = vld [vmem:[#allocation6 + $0x20] sm:$0xff]
      %v109 = vld [vmem:[#allocation6 + $0x28] sm:$0xff]
      %v110 = vld [vmem:[#allocation6 + $0x30] sm:$0xff]
      %v111 = vld [vmem:[#allocation6 + $0x38] sm:$0xff]
      %v112 = vld [vmem:[#allocation6 + $0x40] sm:$0xff]
      %v113 = vld [vmem:[#allocation6 + $0x48] sm:$0xff]
      %v114 = vld [vmem:[#allocation6 + $0x50] sm:$0xff]
      %v115 = vld [vmem:[#allocation6 + $0x58] sm:$0xff]
      %v116 = vld [vmem:[#allocation6 + $0x60] sm:$0xff]
      %v117 = vld [vmem:[#allocation6 + $0x68] sm:$0xff]
      %v118 = vld [vmem:[#allocation6 + $0x70] sm:$0xff]
      %v119 = vld [vmem:[#allocation6 + $0x78] sm:$0xff]
      %v120 = vld [vmem:[%s2] sm:$0x1]
      %v122 = vlaneseq
      %v123 = vshrl.u32 %v122, 7
      %v124 = vsub.s32 0, %v123
      %v125 = vrot.slane %v120, %v124
      %vm129 = vcmask 1041409
      %v130 = vsel %vm129, %v103, %v102
      %132 = vmatprep.subr.mxu0 0.0
      %133 = vmatpush1.msra.mxu0 %v119
      %134 = vmatprep.subr.mxu0 0.0
      %135 = vmatpush1.msra.mxu0 %v118
      %136 = vmatprep.subr.mxu0 0.0
      %137 = vmatpush1.msra.mxu0 %v117
      %138 = vmatprep.subr.mxu0 0.0
      %139 = vmatpush1.msra.mxu0 %v116
      %140 = vmatprep.subr.mxu0 0.0
      %141 = vmatpush1.msra.mxu0 %v115
      %142 = vmatprep.subr.mxu0 0.0
      %143 = vmatpush1.msra.mxu0 %v114
      %144 = vmatprep.subr.mxu0 0.0
      %145 = vmatpush1.msra.mxu0 %v113
      %146 = vmatprep.subr.mxu0 0.0
      %147 = vmatpush1.msra.mxu0 %v112
      %148 = vmatprep.subr.mxu0 0.0
      %149 = vmatpush1.msra.mxu0 %v111
      %150 = vmatprep.subr.mxu0 0.0
      %151 = vmatpush1.msra.mxu0 %v110
      %152 = vmatprep.subr.mxu0 0.0
      %153 = vmatpush1.msra.mxu0 %v109
      %154 = vmatprep.subr.mxu0 0.0
      %155 = vmatpush1.msra.mxu0 %v108
      %156 = vmatprep.subr.mxu0 0.0
      %157 = vmatpush1.msra.mxu0 %v107
      %158 = vmatprep.subr.mxu0 0.0
      %159 = vmatpush1.msra.mxu0 %v106
      %160 = vmatprep.subr.mxu0 0.0
      %161 = vmatpush1.msra.mxu0 %v105
      %162 = vmatprep.subr.mxu0 0.0
      %163 = vmatpush1.msra.mxu0 %v104
      %164 = vmatprep.subr.mxu0 0.0
      %165 = vmatpush2.msra.mxu0 0.0
      %166 = vmatprep.subr.mxu0 0.0
      %167 = vmatpush2.msra.mxu0 0.0
      %168 = vmatprep.subr.mxu0 0.0
      %169 = vmatpush2.msra.mxu0 0.0
      %170 = vmatprep.subr.mxu0 0.0
      %171 = vmatpush2.msra.mxu0 0.0
      %172 = vmatprep.subr.mxu0 0.0
      %173 = vmatpush2.msra.mxu0 0.0
      %174 = vmatprep.subr.mxu0 0.0
      %175 = vmatpush2.msra.mxu0 0.0
      %176 = vmatprep.subr.mxu0 0.0
      %177 = vmatpush2.msra.mxu0 0.0
      %178 = vmatprep.subr.mxu0 0.0
      %179 = vmatpush2.msra.mxu0 0.0
      %180 = vmatprep.subr.mxu0 0.0
      %181 = vmatpush2.msra.mxu0 0.0
      %182 = vmatprep.subr.mxu0 0.0
      %183 = vmatpush2.msra.mxu0 0.0
      %184 = vmatprep.subr.mxu0 0.0
      %185 = vmatpush2.msra.mxu0 0.0
      %186 = vmatprep.subr.mxu0 0.0
      %187 = vmatpush2.msra.mxu0 0.0
      %188 = vmatprep.subr.mxu0 0.0
      %189 = vmatpush2.msra.mxu0 0.0
      %190 = vmatprep.subr.mxu0 0.0
      %191 = vmatpush2.msra.mxu0 0.0
      %192 = vmatprep.subr.mxu0 0.0
      %193 = vmatpush2.msra.mxu0 0.0
      %194 = vmatprep.subr.mxu0 0.0
      %195 = vmatpush2.msra.mxu0 0.0
      %196 = vmatprep.mubr.f32.mxu0 0.0
      %197 = vmatmul.mubr.f32.gmra.mxu0 %v130
      %v198 = vpop.f32.mrf.mxu0
      %v199 = vadd.f32 %v125, %v198
      %v200 = vpop.f32.mrf.mxu0
      %201 = vdwg.mxu0
      %202 = vst [vmem:[#allocation8] sm:$0x3] %v199
    $region29: #{tpu_custom_call.1} parent=1 // pred_fallthru
      _
    // Predicated region
    $region30: #{tpu_custom_call.1} parent=1 // pred_check
      _
    $region31: #{tpu_custom_call.1} parent=1 // pred_check_branch
      %204 = sbr.rel (0) target = $region33
    $region32: #{tpu_custom_call.1} parent=1 // pred_region
      %s206 = ssub.s32 32, 32
      %207 = vsyncadd [#allocation5], %s206
      %s209 = sshll.u32 [#allocation8], 4
      %s210 = int_to_ptr.vmem [resolvable:$true] %s209
      %212 = dma.vmem_to_hbm [thread:$0]  %s210, 32, %s3, [#allocation5]
    $region33: #{tpu_custom_call.1} parent=1 // pred_fallthru
      _
    // Predicated region
    $region34: #{tpu_custom_call.1} parent=1 // pred_check
      _
    $region35: #{tpu_custom_call.1} parent=1 // pred_check_branch
      %214 = sbr.rel (0) target = $region37
    $region36: #{tpu_custom_call.1} parent=1 // pred_region
      %215 = dma.done [#allocation5], 32
    $region37: #{tpu_custom_call.1} parent=1 // pred_fallthru
      _
    %216 = vsyncpa [#allocation4], 1
    %217 = vsyncpa [#allocation7], 1
    %218 = vsyncpa [#allocation5], 1

</llo_original>
